<compile_context>
chip_gen: v7x
topology: tpu7x:2x2x1
jax: 0.10.0
libtpu: 0.0.40
codegen_flags: <defaults>
</compile_context>

<pallas_src>
import functools

import jax
import jax.numpy as jnp
from jax import lax
from jax.experimental import pallas as pl
from jax.experimental.pallas import tpu as pltpu

_LANE = 128


def _rmse_partial_kernel(x_ref, y_ref, o_ref, *, block_rows, chunk, n_chunks,
                         rows_needed, needs_mask):
    """Writes this block's sum of squared differences as a (1, 1, 128) partial."""
    i = pl.program_id(0)
    base = i * block_rows  # global row offset of this block

    def body(c, acc):
        start = pl.multiple_of(c * chunk, chunk)
        xd = x_ref[pl.ds(start, chunk), :].astype(jnp.float32)
        yd = y_ref[pl.ds(start, chunk), :].astype(jnp.float32)
        d = xd - yd
        dd = d * d
        if needs_mask:
            # Rows past the end of the (rows_needed, 128) slab hold garbage
            # (Pallas does not zero OOB block rows) -> zero them before reducing.
            row = base + start + lax.broadcasted_iota(jnp.int32, (chunk, _LANE), 0)
            dd = jnp.where(row < rows_needed, dd, 0.0)
        return acc + jnp.sum(dd, axis=0, keepdims=True)

    acc = jnp.zeros((1, _LANE), jnp.float32)
    acc = lax.fori_loop(0, n_chunks, body, acc, unroll=(n_chunks <= 8))
    o_ref[...] = acc[None]  # (1, 1, 128) per-block partial sum


def _packed_sublane(dtype):
    # f32 -> 8 rows per packed sublane tile, bf16 -> 16, int8/fp8 -> 32.
    return max(8, 32 // jnp.dtype(dtype).itemsize)


def rmse_loss(gen_frames, gt_frames, *, block_rows=None):
    """RMSE loss: sqrt(mean((gen - gt)^2)) over all elements. Returns a scalar."""
    assert gen_frames.shape == gt_frames.shape
    n = gen_frames.size
    assert n > 0

    sub = max(_packed_sublane(gen_frames.dtype), _packed_sublane(gt_frames.dtype))
    rows_needed = pl.cdiv(n, _LANE)

    def prep(a):
        a = jnp.ravel(a)
        pad = rows_needed * _LANE - n
        if pad:
            # Ragged tail (n % 128 != 0) only: zero-pad to the next lane multiple.
            # Zero diffs contribute nothing; we divide by the true element count.
            a = jnp.pad(a, (0, pad))
        return a.reshape(rows_needed, _LANE)

    x2 = prep(gen_frames)
    y2 = prep(gt_frames)

    # Default 4096 rows: 2 MiB/tile per f32 input, 8 MiB double-buffered.
    if block_rows is None:
        block_rows = 4096
    block_rows = max(sub, sub * pl.cdiv(int(block_rows), sub))
    if block_rows >= rows_needed:
        block_rows = rows_needed  # single full-array block (block == array dims is legal)

    # Inner chunk that divides block_rows; bounds in-kernel temporaries to ~chunk*128 f32.
    chunk = block_rows
    for c in (512, 256, 128, 64, 32, 16, 8):
        if c >= sub and block_rows % c == 0:
            chunk = c
            break
    n_chunks = block_rows // chunk

    n_blocks = pl.cdiv(rows_needed, block_rows)
    needs_mask = (rows_needed % block_rows) != 0

    kernel = functools.partial(
        _rmse_partial_kernel,
        block_rows=block_rows, chunk=chunk, n_chunks=n_chunks,
        rows_needed=rows_needed, needs_mask=needs_mask)

    itemsize = max(jnp.dtype(gen_frames.dtype).itemsize,
                   jnp.dtype(gt_frames.dtype).itemsize)
    dbuf_bytes = 2 * 2 * block_rows * _LANE * itemsize  # 2 inputs x 2 pipeline buffers
    vmem_limit = None
    if dbuf_bytes > 12 * (1 << 20):
        # Raise the scoped-VMEM limit only when needed; stay well under v7x's 64 MiB.
        vmem_limit = min(dbuf_bytes + 8 * (1 << 20), 56 * (1 << 20))

    partials = pl.pallas_call(
        kernel,
        out_shape=jax.ShapeDtypeStruct((n_blocks, 1, _LANE), jnp.float32),
        grid=(n_blocks,),
        in_specs=[
            pl.BlockSpec((block_rows, _LANE), lambda i: (i, 0)),
            pl.BlockSpec((block_rows, _LANE), lambda i: (i, 0)),
        ],
        out_specs=pl.BlockSpec((1, 1, _LANE), lambda i: (i, 0, 0)),
        compiler_params=pltpu.CompilerParams(
            # Per-block partials are independent -> truly parallel axis; on v7x this
            # shards the HBM scan across both TensorCores.
            dimension_semantics=("parallel",),
            vmem_limit_bytes=vmem_limit),
    )(x2, y2)

    # Tiny scalar finalize in the wrapper (hierarchical partial sums -> better f32 accuracy).
    total = jnp.sum(partials)
    out_dtype = jnp.result_type(gen_frames.dtype, gt_frames.dtype)
    if not jnp.issubdtype(out_dtype, jnp.floating):
        out_dtype = jnp.float32
    return jnp.sqrt(total / n).astype(out_dtype)


def rmse_loss_ref(gen_frames, gt_frames):
    d = gen_frames.astype(jnp.float32) - gt_frames.astype(jnp.float32)
    return jnp.sqrt(jnp.mean(d * d))


if __name__ == "__main__":
    key = jax.random.PRNGKey(0)
    k1, k2, k3, k4, k5, k6, k7, k8 = jax.random.split(key, 8)

    # 1) Small frames (batch=2, channels=4, 16x16), multi-block grid, no padding, no mask.
    gen = jax.random.normal(k1, (2, 4, 16, 16), dtype=jnp.float32)
    gt = jax.random.normal(k2, (2, 4, 16, 16), dtype=jnp.float32)
    out = jax.block_until_ready(rmse_loss(gen, gt, block_rows=8))
    assert out.shape == ()
    assert jnp.allclose(out, rmse_loss_ref(gen, gt), atol=1e-5, rtol=1e-5)

    # 2) Odd total size (n % 128 != 0): minimal lane padding, single tiny full-array block.
    a = jax.random.normal(k3, (3, 5, 7), dtype=jnp.float32)
    b = jax.random.normal(k4, (3, 5, 7), dtype=jnp.float32)
    out2 = jax.block_until_ready(rmse_loss(a, b))
    assert jnp.allclose(out2, rmse_loss_ref(a, b), atol=1e-5, rtol=1e-5)

    # 3) Ragged last block across a multi-block grid (in-kernel row-mask path).
    c = jax.random.normal(k5, (5, 7, 64), dtype=jnp.float32)
    d = jax.random.normal(k6, (5, 7, 64), dtype=jnp.float32)
    out3 = jax.block_until_ready(rmse_loss(c, d, block_rows=8))
    assert jnp.allclose(out3, rmse_loss_ref(c, d), atol=1e-5, rtol=1e-5)

    # 4) Production path: default 4096-row blocks, 2 blocks, ragged mask, unrolled chunks.
    e = jax.random.normal(k7, (4, 3, 256, 256), dtype=jnp.float32)
    f = jax.random.normal(k8, (4, 3, 256, 256), dtype=jnp.float32)
    out4 = jax.block_until_ready(rmse_loss(e, f))
    assert jnp.allclose(out4, rmse_loss_ref(e, f), atol=1e-5, rtol=1e-5)

    # 5) Native-dtype (bf16) inputs: half the HBM traffic, widened to f32 in-kernel.
    gb = jax.random.normal(k1, (2, 3, 129), dtype=jnp.float32).astype(jnp.bfloat16)
    hb = jax.random.normal(k2, (2, 3, 129), dtype=jnp.float32).astype(jnp.bfloat16)
    out5 = jax.block_until_ready(rmse_loss(gb, hb))
    ref5 = rmse_loss_ref(gb, hb)
    assert jnp.allclose(out5.astype(jnp.float32), ref5, rtol=2e-2, atol=2e-2)

    print("KERNEL_OK")
</pallas_src>

<mosaic_0001>
module attributes {stable_mosaic.version = 11 : i64} {
  func.func @_rmse_partial_kernel(%arg0: i32, %arg1: memref<8x128xf32, #tpu.memory_space<vmem>>, %arg2: memref<8x128xf32, #tpu.memory_space<vmem>>, %arg3: memref<1x1x128xf32, #tpu.memory_space<vmem>>) attributes {dimension_semantics = [#tpu.dimension_semantics<parallel>], iteration_bounds = array<i64: 2>, scalar_prefetch = 0 : i64, scratch_operands = 0 : i64, tpu.core_type = #tpu.core_type<tc>, window_params = [{transform_indices = @transform_0, window_bounds = array<i64: 8, 128>}, {transform_indices = @transform_1, window_bounds = array<i64: 8, 128>}, {transform_indices = @transform_2, window_bounds = array<i64: 1, 1, 128>}]} {
    %cst = arith.constant 0.000000e+00 : f32
    %0 = vector.broadcast %cst : f32 to vector<1x128xf32>
    %c0_i32 = arith.constant 0 : i32
    %c8_i32 = arith.constant 8 : i32
    %1 = arith.muli %c0_i32, %c8_i32 : i32
    %2 = tpu.assume_multiple %1, 8 : i32
    %3 = arith.index_cast %2 : i32 to index
    %c0 = arith.constant 0 : index
    %4 = vector.load %arg1[%3, %c0] : memref<8x128xf32, #tpu.memory_space<vmem>>, vector<8x128xf32>
    %5 = arith.index_cast %2 : i32 to index
    %c0_0 = arith.constant 0 : index
    %6 = vector.load %arg2[%5, %c0_0] : memref<8x128xf32, #tpu.memory_space<vmem>>, vector<8x128xf32>
    %7 = arith.subf %4, %6 : vector<8x128xf32>
    %8 = arith.mulf %7, %7 : vector<8x128xf32>
    %cst_1 = arith.constant dense<0.000000e+00> : vector<128xf32>
    %9 = vector.multi_reduction <add>, %8, %cst_1 [0] : vector<8x128xf32> to vector<128xf32>
    %10 = vector.shape_cast %9 : vector<128xf32> to vector<1x128xf32>
    %11 = arith.addf %0, %10 : vector<1x128xf32>
    %c1_i32 = arith.constant 1 : i32
    %12 = vector.shape_cast %11 : vector<1x128xf32> to vector<1x1x128xf32>
    %c0_2 = arith.constant 0 : index
    %c0_3 = arith.constant 0 : index
    %c0_4 = arith.constant 0 : index
    %13 = vector.load %arg3[%c0_2, %c0_3, %c0_4] : memref<1x1x128xf32, #tpu.memory_space<vmem>>, vector<1x1x128xf32>
    tpu.vector_store %arg3[%c0_2, %c0_3, %c0_4], %12 {strides = array<i32>} : memref<1x1x128xf32, #tpu.memory_space<vmem>>, vector<1x1x128xf32>,
    return
  }
  func.func @transform_0(%arg0: i32) -> (i32, i32) {
    %c0_i32 = arith.constant 0 : i32
    %c0_i32_0 = arith.constant 0 : i32
    return %arg0, %c0_i32 : i32, i32
  }
  func.func @transform_1(%arg0: i32) -> (i32, i32) {
    %c0_i32 = arith.constant 0 : i32
    %c0_i32_0 = arith.constant 0 : i32
    return %arg0, %c0_i32 : i32, i32
  }
  func.func @transform_2(%arg0: i32) -> (i32, i32, i32) {
    %c0_i32 = arith.constant 0 : i32
    %c0_i32_0 = arith.constant 0 : i32
    %c0_i32_1 = arith.constant 0 : i32
    return %arg0, %c0_i32, %c0_i32_0 : i32, i32, i32
  }
}

</mosaic_0001>

<llo_original>
// kernel: tpu_custom_call.1
$region0: #{tpu_custom_call.1}
  #allocation0 [shape = 'u32[]', space=smem, size = 0x4, offset = 0x4, fixed_abs, tag = 'smem constant byte address 0x4 - core index']
  #allocation1 [shape = 'u32[144,128]{1,0:T(1,128)}', space=vmem, size = 0x12000, scoped, tag = 'internal scratch']
  %s0 = inlined_call_operand.hbm [shape: f32[16,128], index: 0, kind: input, shape index: {}]
  %s1 = inlined_call_operand.hbm [shape: f32[16,128], index: 1, kind: input, shape index: {}]
  %s2 = inlined_call_operand.hbm [shape: f32[2,1,128], index: 2, kind: output, shape index: {}]
  %s3 = sld [smem:[#allocation0]]
  $region49: #{tpu_custom_call.1} parent=0
    _
  %s5 = ssub.s32 1, %s3
  %s6 = scalar_select 0, %s5, %s3
  $region1: #{tpu_custom_call.1} parent=0
    #allocation2 [shape = 'u8[8192]{0}', space=vmem, size = 0x2000, scoped, tag = 'input window, operand 0']
    #allocation3 [shape = 's32[2]{0}', space=sflag, size = 0x8, scoped, tag = 'scoped memory for tpu_custom_call.1']
    #allocation4 [shape = 's32[2]{0}', space=sflag, size = 0x8, scoped, tag = 'scoped memory for tpu_custom_call.1']
    #allocation5 [shape = 'u8[8192]{0}', space=vmem, size = 0x2000, scoped, tag = 'input window, operand 1']
    #allocation6 [shape = 's32[2]{0}', space=sflag, size = 0x8, scoped, tag = 'scoped memory for tpu_custom_call.1']
    #allocation7 [shape = 'u8[1024]{0}', space=vmem, size = 0x400, scoped, tag = 'output window, operand 0']
    %7 = vsyncpa [#allocation3], 0
    %s8 = scalar_lea.sflag [#allocation3], 1
    %9 = vsyncpa %s8, 0
    %10 = vsyncpa [#allocation6], 0
    %s11 = scalar_lea.sflag [#allocation6], 1
    %12 = vsyncpa %s11, 0
    %13 = vsyncpa [#allocation4], 0
    %s14 = scalar_lea.sflag [#allocation4], 1
    %15 = vsyncpa %s14, 0
    loop: start=0, step=1, limit=4
    $region2: #{tpu_custom_call.1} parent=1 // loop_pre_header
      _
    $region3: #{tpu_custom_call.1} parent=1 // loop_header
      %s17 = sphi 0, %s21
      %p18 = scmp.ge.s32.totalorder %s17, 4
      %s27 = sphi 0, %s29
      %s30 = sphi 0, %s27
      %s31 = sphi 0, %s30
      %s47 = sphi 0, %s31
      %s53 = sphi 0, %s55
      %s56 = sphi 0, %s53
      %s57 = sphi 0, %s56
      %s73 = sphi 0, %s57
      %s79 = sphi 0, %s81
      %s82 = sphi 0, %s79
      %s83 = sphi 0, %s82
      %s99 = sphi 0, %s83
    $region4: #{tpu_custom_call.1} parent=1 // loop_header_branch
      %20 = sbr.rel (%p18) target = $region8
    $region5: #{tpu_custom_call.1} parent=1 // loop_body
      %s22 = ssub.s32 %s17, 1
      %s23 = ssub.s32 %s17, 2
      %s24 = sadd.s32 %s17, 1
      %s25 = ssub.s32 %s17, %s24
      %p26 = scmp.eq.s32.totalorder %s25, 0
      %s28 = sadd.s32 %s27, 1
      %s29 = scalar_select %p26, %s27, %s28
      %p32 = pneg %p26
      %p33 = scmp.eq.s32.totalorder %s17, 1
      %p34 = por %p32, %p33
      %p35 = scmp.ne.s32.totalorder %s27, %s30
      %p36 = scmp.eq.s32.totalorder %s17, 0
      %p37 = por %p35, %p36
      %p38 = scmp.ne.s32.totalorder %s27, %s30
      %p39 = scmp.eq.s32.totalorder %s22, 1
      %p40 = por %p38, %p39
      %p41 = scmp.ne.s32.totalorder %s30, %s31
      %p42 = scmp.eq.s32.totalorder %s22, 0
      %p43 = por %p41, %p42
      %p44 = scmp.ne.s32.totalorder %s30, %s31
      %p45 = scmp.eq.s32.totalorder %s23, 1
      %p46 = por %p44, %p45
      %p48 = scmp.ne.s32.totalorder %s31, %s47
      %p49 = scmp.eq.s32.totalorder %s23, 0
      %p50 = por %p48, %p49
      %s51 = ssub.s32 %s17, %s24
      %p52 = scmp.eq.s32.totalorder %s51, 0
      %s54 = sadd.s32 %s53, 1
      %s55 = scalar_select %p52, %s53, %s54
      %p58 = pneg %p52
      %p59 = scmp.eq.s32.totalorder %s17, 1
      %p60 = por %p58, %p59
      %p61 = scmp.ne.s32.totalorder %s53, %s56
      %p62 = scmp.eq.s32.totalorder %s17, 0
      %p63 = por %p61, %p62
      %p64 = scmp.ne.s32.totalorder %s53, %s56
      %p65 = scmp.eq.s32.totalorder %s22, 1
      %p66 = por %p64, %p65
      %p67 = scmp.ne.s32.totalorder %s56, %s57
      %p68 = scmp.eq.s32.totalorder %s22, 0
      %p69 = por %p67, %p68
      %p70 = scmp.ne.s32.totalorder %s56, %s57
      %p71 = scmp.eq.s32.totalorder %s23, 1
      %p72 = por %p70, %p71
      %p74 = scmp.ne.s32.totalorder %s57, %s73
      %p75 = scmp.eq.s32.totalorder %s23, 0
      %p76 = por %p74, %p75
      %s77 = ssub.s32 %s17, %s24
      %p78 = scmp.eq.s32.totalorder %s77, 0
      %s80 = sadd.s32 %s79, 1
      %s81 = scalar_select %p78, %s79, %s80
      %p84 = pneg %p78
      %p85 = scmp.eq.s32.totalorder %s17, 1
      %p86 = por %p84, %p85
      %p87 = scmp.ne.s32.totalorder %s79, %s82
      %p88 = scmp.eq.s32.totalorder %s17, 0
      %p89 = por %p87, %p88
      %p90 = scmp.ne.s32.totalorder %s79, %s82
      %p91 = scmp.eq.s32.totalorder %s22, 1
      %p92 = por %p90, %p91
      %p93 = scmp.ne.s32.totalorder %s82, %s83
      %p94 = scmp.eq.s32.totalorder %s22, 0
      %p95 = por %p93, %p94
      %p96 = scmp.ne.s32.totalorder %s82, %s83
      %p97 = scmp.eq.s32.totalorder %s23, 1
      %p98 = por %p96, %p97
      %p100 = scmp.ne.s32.totalorder %s83, %s99
      %p101 = scmp.eq.s32.totalorder %s23, 0
      %p102 = por %p100, %p101
      %p103 = scmp.le.s32.totalorder 1, %s17
      %p104 = scmp.lt.s32.totalorder %s17, 3
      %p105 = pnand %p103, %p104
      %p106 = pneg %p105
      // Predicated region
      $region9: #{tpu_custom_call.1} parent=5 // pred_check
        _
      $region10: #{tpu_custom_call.1} parent=5 // pred_check_branch
        %108 = sbr.rel (%p105) target = $region12
      $region11: #{tpu_custom_call.1} parent=5 // pred_region
        %s109 = ssub.s32 %s17, 1
      $region12: #{tpu_custom_call.1} parent=5 // pred_fallthru
        _
      %p110 = scmp.lt.s32.totalorder %s17, 2
      // Predicated region
      $region13: #{tpu_custom_call.1} parent=5 // pred_check
        %p111 = pneg %p110
      $region14: #{tpu_custom_call.1} parent=5 // pred_check_branch
        %113 = sbr.rel (%p111) target = $region16
      $region15: #{tpu_custom_call.1} parent=5 // pred_region
        // Predicated region
        $region17: #{tpu_custom_call.1} parent=15 // pred_check
          %p114 = pneg %p37
        $region18: #{tpu_custom_call.1} parent=15 // pred_check_branch
          %116 = sbr.rel (%p114) target = $region20
        $region19: #{tpu_custom_call.1} parent=15 // pred_region
          %s117 = sand.u32 %s27, 1
          %s118 = scalar_lea.sflag [#allocation3], %s117
          %s119 = sand.u32 %s27, 1
          %s120 = smul.addr %s119, 8
          %s121 = scalar_lea.vmem [#allocation2], %s120
          %s123 = ssub.s32 128, 128
          %124 = vsyncadd %s118, %s123
          %s125 = smul.addr %s17, 128
          %s126 = scalar_lea.hbm %s0, %s125
          %s128 = sshll.u32 %s121, 4
          %s129 = int_to_ptr.vmem [resolvable:$true] %s128
          %131 = dma.hbm_to_vmem [thread:$0]  %s126, 128, %s129, %s118
        $region20: #{tpu_custom_call.1} parent=15 // pred_fallthru
          _
        // Predicated region
        $region21: #{tpu_custom_call.1} parent=15 // pred_check
          %p132 = pneg %p63
        $region22: #{tpu_custom_call.1} parent=15 // pred_check_branch
          %134 = sbr.rel (%p132) target = $region24
        $region23: #{tpu_custom_call.1} parent=15 // pred_region
          %s135 = sand.u32 %s53, 1
          %s136 = scalar_lea.sflag [#allocation6], %s135
          %s137 = sand.u32 %s53, 1
          %s138 = smul.addr %s137, 8
          %s139 = scalar_lea.vmem [#allocation5], %s138
          %s141 = ssub.s32 128, 128
          %142 = vsyncadd %s136, %s141
          %s143 = smul.addr %s17, 128
          %s144 = scalar_lea.hbm %s1, %s143
          %s146 = sshll.u32 %s139, 4
          %s147 = int_to_ptr.vmem [resolvable:$true] %s146
          %149 = dma.hbm_to_vmem [thread:$0]  %s144, 128, %s147, %s136
        $region24: #{tpu_custom_call.1} parent=15 // pred_fallthru
          _
      $region16: #{tpu_custom_call.1} parent=5 // pred_fallthru
        _
      %p150 = scmp.le.s32.totalorder 1, %s17
      %p151 = scmp.lt.s32.totalorder %s17, 3
      %p152 = pnand %p150, %p151
      %p153 = pneg %p152
      // Predicated region
      $region25: #{tpu_custom_call.1} parent=5 // pred_check
        _
      $region26: #{tpu_custom_call.1} parent=5 // pred_check_branch
        %155 = sbr.rel (%p152) target = $region28
      $region27: #{tpu_custom_call.1} parent=5 // pred_region
        %s156 = ssub.s32 %s17, 1
        %s157 = sand.u32 %s30, 1
        %s158 = scalar_lea.sflag [#allocation3], %s157
        %s159 = sand.u32 %s30, 1
        %s160 = smul.addr %s159, 8
        %s161 = scalar_lea.vmem [#allocation2], %s160
        // Predicated region
        $region29: #{tpu_custom_call.1} parent=27 // pred_check
          %p162 = pneg %p43
        $region30: #{tpu_custom_call.1} parent=27 // pred_check_branch
          %164 = sbr.rel (%p162) target = $region32
        $region31: #{tpu_custom_call.1} parent=27 // pred_region
          %165 = dma.done %s158, 128
        $region32: #{tpu_custom_call.1} parent=27 // pred_fallthru
          _
        %s166 = sand.u32 %s56, 1
        %s167 = scalar_lea.sflag [#allocation6], %s166
        %s168 = sand.u32 %s56, 1
        %s169 = smul.addr %s168, 8
        %s170 = scalar_lea.vmem [#allocation5], %s169
        // Predicated region
        $region33: #{tpu_custom_call.1} parent=27 // pred_check
          %p171 = pneg %p69
        $region34: #{tpu_custom_call.1} parent=27 // pred_check_branch
          %173 = sbr.rel (%p171) target = $region36
        $region35: #{tpu_custom_call.1} parent=27 // pred_region
          %174 = dma.done %s167, 128
        $region36: #{tpu_custom_call.1} parent=27 // pred_fallthru
          _
        %s175 = sand.u32 %s30, 1
        %s176 = scalar_lea.sflag [#allocation3], %s175
        %s177 = sand.u32 %s30, 1
        %s178 = smul.addr %s177, 8
        %s179 = scalar_lea.vmem [#allocation2], %s178
        %p180 = pneg %p43
        %p181 = pneg %p40
        %s182 = sand.u32 %s56, 1
        %s183 = scalar_lea.sflag [#allocation6], %s182
        %s184 = sand.u32 %s56, 1
        %s185 = smul.addr %s184, 8
        %s186 = scalar_lea.vmem [#allocation5], %s185
        %p187 = pneg %p69
        %p188 = pneg %p66
        %p189 = pneg %p95
        %p190 = pneg %p92
        %s191 = sand.u32 %s82, 1
        %s192 = scalar_lea.sflag [#allocation4], %s191
        %s193 = sand.u32 %s82, 1
        %s194 = scalar_lea.vmem [#allocation7], %s193
        %v195 = vld [vmem:[%s161] sm:$0xff]
        %v196 = vld [vmem:[%s170] sm:$0xff]
        %v197 = vsub.f32 %v195, %v196
        %v198 = vmul.f32 %v197, %v197
        %v199 = vrot.slane %v198, 4
        %v200 = vadd.f32 %v198, %v199
        %v201 = vrot.slane %v200, 2
        %v202 = vadd.f32 %v200, %v201
        %v203 = vrot.slane %v202, 1
        %v204 = vadd.f32 %v202, %v203
        %v205 = vadd.f32 %v204, 0.0
        %206 = vst [vmem:[%s194] sm:$0x1] %v205
        %s207 = sand.u32 %s82, 1
        %s208 = scalar_lea.sflag [#allocation4], %s207
        %s209 = sand.u32 %s82, 1
        %s210 = scalar_lea.vmem [#allocation7], %s209
        // Predicated region
        $region37: #{tpu_custom_call.1} parent=27 // pred_check
          %p211 = pneg %p92
        $region38: #{tpu_custom_call.1} parent=27 // pred_check_branch
          %213 = sbr.rel (%p211) target = $region40
        $region39: #{tpu_custom_call.1} parent=27 // pred_region
          %s215 = ssub.s32 16, 16
          %216 = vsyncadd %s208, %s215
          %s217 = smul.addr %s22, 16
          %s218 = scalar_lea.hbm %s2, %s217
          %s220 = sshll.u32 %s210, 4
          %s221 = int_to_ptr.vmem [resolvable:$true] %s220
          %223 = dma.vmem_to_hbm [thread:$0]  %s221, 16, %s218, %s208
        $region40: #{tpu_custom_call.1} parent=27 // pred_fallthru
          _
      $region28: #{tpu_custom_call.1} parent=5 // pred_fallthru
        _
      %p224 = scmp.le.s32.totalorder 2, %s17
      // Predicated region
      $region41: #{tpu_custom_call.1} parent=5 // pred_check
        %p225 = pneg %p224
      $region42: #{tpu_custom_call.1} parent=5 // pred_check_branch
        %227 = sbr.rel (%p225) target = $region44
      $region43: #{tpu_custom_call.1} parent=5 // pred_region
        %s228 = ssub.s32 %s17, 2
        // Predicated region
        $region45: #{tpu_custom_call.1} parent=43 // pred_check
          %p229 = pneg %p98
        $region46: #{tpu_custom_call.1} parent=43 // pred_check_branch
          %231 = sbr.rel (%p229) target = $region48
        $region47: #{tpu_custom_call.1} parent=43 // pred_region
          %s232 = sand.u32 %s83, 1
          %s233 = scalar_lea.sflag [#allocation4], %s232
          %s234 = sand.u32 %s83, 1
          %s235 = scalar_lea.vmem [#allocation7], %s234
          %236 = dma.done %s233, 16
        $region48: #{tpu_custom_call.1} parent=43 // pred_fallthru
          _
      $region44: #{tpu_custom_call.1} parent=5 // pred_fallthru
        _
    $region6: #{tpu_custom_call.1} parent=1 // loop_footer
      %s21 = sadd.s32 1, %s17
    $region7: #{tpu_custom_call.1} parent=1 // loop_footer_branch
      %16 = sbr.rel target = $region3
    $region8: #{tpu_custom_call.1} parent=1 // loop_exit
      _
    %237 = vsyncpa [#allocation3], 1
    %s238 = scalar_lea.sflag [#allocation3], 1
    %239 = vsyncpa %s238, 1
    %240 = vsyncpa [#allocation6], 1
    %s241 = scalar_lea.sflag [#allocation6], 1
    %242 = vsyncpa %s241, 1
    %243 = vsyncpa [#allocation4], 1
    %s244 = scalar_lea.sflag [#allocation4], 1
    %245 = vsyncpa %s244, 1

</llo_original>
